<compile_context>
chip_gen: v7x
topology: tpu7x:2x2x1
jax: 0.10.0
libtpu: 0.0.40
codegen_flags: <defaults>
</compile_context>

<pallas_src>
import functools

import jax
import jax.numpy as jnp
from jax import lax
from jax.experimental import pallas as pl
from jax.experimental.pallas import tpu as pltpu

NUM_NODES = 4        # total_state_dim = system_state_dim + 4 * node_embedding_dim
HIDDEN = 64          # actor / critic hidden width (fixed by the module)
FUSED = 2 * HIDDEN   # fused actor||critic lane width == 128 (one full vreg)


def _round_up(x, m):
    return ((x + m - 1) // m) * m


def _device_kind():
    try:
        return jax.devices()[0].device_kind.lower()
    except Exception:
        return ""


_KIND = _device_kind()
# bf16 transcendentals only where EUP/VPU are bf16-native (v6e / v7x); f32 on v5e.
_DEFAULT_ACT_BF16 = ("v6" in _KIND) or ("v7" in _KIND)
# v7x has 2 TensorCores/chip -> keep >= 2 grid steps so "parallel" can shard the batch.
_DEFAULT_MIN_STEPS = 2 if "v7" in _KIND else 1


def actor_critic_kernel(x_ref, w_in_ref, w_e2_ref, w_l1e_ref, w_l23_ref,
                        b_emb_ref, b_main_ref, out_ref, *, action_dim, act_dtype):
    f32 = jnp.float32
    bf16 = jnp.bfloat16
    bm = x_ref.shape[0]
    e4 = w_e2_ref.shape[0]            # 4 * node_embedding_dim (= 256 for E=64)

    x = x_ref[...]                    # bf16 [bm, s_pad + 4*N], batch-major, lane-dense

    # One matmul produces BOTH the block-diagonal embedding pre-activation (cols 0:4E)
    # and the layer-1 partial coming from the raw (system) input (cols 4E:4E+128).
    z = jnp.dot(x, w_in_ref[...], preferred_element_type=f32)          # [bm, 4E+128] f32
    h = jnp.tanh((z[:, :e4] + b_emb_ref[0:1, :]).astype(act_dtype))    # [bm, 4E]
    acc_x = z[:, e4:]                                                  # [bm, 128]

    # Embedding layer 2 (block-diagonal) -> lane-dense [bm, 4E] embedding slab.
    emb = jnp.dot(h.astype(bf16), w_e2_ref[...],
                  preferred_element_type=f32) + b_emb_ref[1:2, :]

    # Fused actor||critic layer 1 (2 matmuls total, no concat, no split-matmul loop).
    acc = acc_x + jnp.dot(emb.astype(bf16), w_l1e_ref[...],
                          preferred_element_type=f32) + b_main_ref[0:1, :]
    h1 = jnp.tanh(acc.astype(act_dtype))                               # [bm, 128]

    # Fused layer 2 (block-diagonal [128,128]).
    h2 = jnp.tanh((jnp.dot(h1.astype(bf16), w_l23_ref[0:FUSED, :],
                           preferred_element_type=f32)
                   + b_main_ref[1:2, :]).astype(act_dtype))

    # Fused head: actor logits in lanes 0..A-1, critic value at lane A.
    head = jnp.dot(h2.astype(bf16), w_l23_ref[FUSED:2 * FUSED, :],
                   preferred_element_type=f32) + b_main_ref[2:3, :]    # [bm, 128] f32

    # Masked softmax over lanes < A — kept entirely in f32 (NaN-safe, exact mask).
    a = action_dim
    lane = lax.broadcasted_iota(jnp.int32, (bm, FUSED), 1)
    logits = jnp.where(lane < a, head, f32(-1e30))
    m = jnp.max(logits, axis=-1, keepdims=True)
    ex = jnp.exp(logits - m)                      # exactly 0 at masked lanes
    denom = jnp.sum(ex, axis=-1, keepdims=True)
    inv = pl.reciprocal(denom, approx=True)       # EUP slot
    probs = ex * inv
    logp = (logits - m) - jnp.log(denom)
    entropy = -jnp.sum(probs * logp, axis=-1, keepdims=True)

    # Single lane-dense output slab: probs | value | entropy | zeros.
    out_ref[...] = jnp.where(
        lane < a, probs,
        jnp.where(lane == a, head,
                  jnp.where(lane == a + 1, entropy, f32(0.0))))


def make_params(key, system_state_dim, node_state_dim, action_dim, node_embedding_dim=64):
    """Deterministic synthetic parameters (torch nn.Linear shapes, stored as [in, out])."""
    total_state_dim = system_state_dim + NUM_NODES * node_embedding_dim
    dims = [
        (node_state_dim, node_embedding_dim), (node_embedding_dim, node_embedding_dim),
        (total_state_dim, HIDDEN), (HIDDEN, HIDDEN), (HIDDEN, action_dim),
        (total_state_dim, HIDDEN), (HIDDEN, HIDDEN), (HIDDEN, 1),
    ]
    params = []
    keys = jax.random.split(key, 2 * len(dims))
    for i, (fan_in, fan_out) in enumerate(dims):
        w = 0.1 * jax.random.normal(keys[2 * i], (fan_in, fan_out), dtype=jnp.float32)
        b = 0.01 * jax.random.normal(keys[2 * i + 1], (1, fan_out), dtype=jnp.float32)
        params.extend([w, b])
    return params  # we1,be1,we2,be2, wa1..ba3, wc1..bc3


def pack_params(params, system_state_dim, node_state_dim, action_dim, num_nodes=NUM_NODES):
    """Repack the 16 nn.Linear arrays into bf16 matmul slabs + f32 bias slabs."""
    (we1, be1, we2, be2,
     wa1, ba1, wa2, ba2, wa3, ba3,
     wc1, bc1, wc2, bc2, wc3, bc3) = params
    f32, bf16 = jnp.float32, jnp.bfloat16
    n = node_state_dim
    e = we1.shape[1]
    s = system_state_dim
    s_pad = _round_up(max(s, 1), 8)
    in_dim = s_pad + num_nodes * n        # lane width of the input slab
    e4 = num_nodes * e

    eye = jnp.eye(num_nodes, dtype=f32)
    we1_bd = jnp.kron(eye, we1)           # [4N, 4E] block-diagonal (shared node MLP)
    we2_bd = jnp.kron(eye, we2)           # [4E, 4E] block-diagonal

    # Fused layer-1 weight (cols 0:64 actor, 64:128 critic).
    w1 = jnp.concatenate([wa1, wc1], axis=1)                    # [S + 4E, 128]
    w1_x = jnp.zeros((in_dim, FUSED), f32).at[:s, :].set(w1[:s])   # raw-input rows only
    w1_e = w1[s:]                                               # [4E, 128] embedding rows

    # One fused input matmul: x @ [ we1 (block-diag, zero rows for sys) | w1_x ]
    we1_full = jnp.zeros((in_dim, e4), f32).at[s_pad:, :].set(we1_bd)
    w_in = jnp.concatenate([we1_full, w1_x], axis=1)            # [in_dim, 4E + 128]

    b_emb = jnp.concatenate([jnp.tile(be1, (1, num_nodes)),
                             jnp.tile(be2, (1, num_nodes))], axis=0)   # [2, 4E]

    z = jnp.zeros((HIDDEN, HIDDEN), f32)                        # block-diagonal layer 2
    w2 = jnp.concatenate([jnp.concatenate([wa2, z], axis=1),
                          jnp.concatenate([z, wc2], axis=1)], axis=0)  # [128, 128]
    # Fused head: actor rows -> lanes 0..A-1, critic rows -> lane A.
    w3 = jnp.zeros((FUSED, FUSED), f32)
    w3 = w3.at[0:HIDDEN, 0:action_dim].set(wa3)
    w3 = w3.at[HIDDEN:FUSED, action_dim:action_dim + 1].set(wc3)
    w_l23 = jnp.concatenate([w2, w3], axis=0)                   # [256, 128]

    b_l1 = jnp.concatenate([ba1, bc1], axis=1)
    b_l2 = jnp.concatenate([ba2, bc2], axis=1)
    b_l3 = jnp.zeros((1, FUSED), f32).at[:, 0:action_dim].set(ba3)
    b_l3 = b_l3.at[:, action_dim:action_dim + 1].set(bc3)
    b_main = jnp.concatenate([b_l1, b_l2, b_l3], axis=0)        # [3, 128]

    return (w_in.astype(bf16), we2_bd.astype(bf16), w1_e.astype(bf16),
            w_l23.astype(bf16), b_emb, b_main)


@functools.partial(jax.jit,
                   static_argnames=("action_dim", "block_b", "act_bf16", "min_grid_steps"))
def actor_critic_forward(system_states, node_states, packed_params, *,
                         action_dim, block_b=1024,
                         act_bf16=_DEFAULT_ACT_BF16, min_grid_steps=_DEFAULT_MIN_STEPS):
    """system_states: [B,S], node_states: [B,4,N] -> (probs [B,A], values [B,1], entropy [B,1])."""
    assert action_dim + 2 <= FUSED, "output-slab packing assumes action_dim <= 126"
    w_in, w_e2, w_l1e, w_l23, b_emb, b_main = packed_params
    bsz, s = system_states.shape
    _, num_nodes, n_dim = node_states.shape
    in_dim = w_in.shape[0]
    s_pad = in_dim - num_nodes * n_dim

    # Batch tile: multiple of 16 (bf16 sublane packing); big by default, capped so that
    # v7x gets at least `min_grid_steps` grid steps for megacore sharding.
    b_round = _round_up(bsz, 16)
    bm = min(_round_up(block_b, 16), b_round)
    if min_grid_steps > 1:
        bm = min(bm, max(16, _round_up(pl.cdiv(b_round, min_grid_steps), 16)))
    nb = pl.cdiv(b_round, bm)
    b_pad = nb * bm

    # Single batch-major, lane-dense input slab: [ sys (padded to s_pad) | node0..node3 ].
    x = jnp.concatenate(
        [jnp.pad(system_states, ((0, 0), (0, s_pad - s))),
         node_states.reshape(bsz, num_nodes * n_dim)], axis=1)
    x = jnp.pad(x, ((0, b_pad - bsz), (0, 0))).astype(jnp.bfloat16)

    kernel = functools.partial(actor_critic_kernel, action_dim=action_dim,
                               act_dtype=jnp.bfloat16 if act_bf16 else jnp.float32)
    const_map = lambda i: (0, 0)               # weights resident across the batch grid

    # TODO(synk): for tiny-batch rollouts the call is launch/weight-DMA bound; keeping the
    # packed weights resident across calls (cross-pallas_call prefetch) would amortize that.
    out = pl.pallas_call(
        kernel,
        out_shape=jax.ShapeDtypeStruct((b_pad, FUSED), jnp.float32),
        grid=(nb,),
        in_specs=[
            pl.BlockSpec((bm, in_dim), lambda i: (i, 0)),
            pl.BlockSpec(w_in.shape, const_map),
            pl.BlockSpec(w_e2.shape, const_map),
            pl.BlockSpec(w_l1e.shape, const_map),
            pl.BlockSpec(w_l23.shape, const_map),
            pl.BlockSpec(b_emb.shape, const_map),
            pl.BlockSpec(b_main.shape, const_map),
        ],
        out_specs=pl.BlockSpec((bm, FUSED), lambda i: (i, 0)),
        compiler_params=pltpu.CompilerParams(dimension_semantics=("parallel",)),
    )(x, w_in, w_e2, w_l1e, w_l23, b_emb, b_main)

    probs = out[:bsz, :action_dim]
    values = out[:bsz, action_dim:action_dim + 1]
    entropy = out[:bsz, action_dim + 1:action_dim + 2]
    return probs, values, entropy


if __name__ == "__main__":
    B = 8
    SYSTEM_STATE_DIM = 8
    NODE_STATE_DIM = 16
    ACTION_DIM = 8
    NODE_EMBEDDING_DIM = 64

    root = jax.random.PRNGKey(0)
    k_params, k_sys, k_nodes, k_act, k_sample = jax.random.split(root, 5)

    params = make_params(k_params, SYSTEM_STATE_DIM, NODE_STATE_DIM,
                         ACTION_DIM, NODE_EMBEDDING_DIM)
    packed = pack_params(params, SYSTEM_STATE_DIM, NODE_STATE_DIM, ACTION_DIM)

    system_states = jax.random.normal(k_sys, (B, SYSTEM_STATE_DIM), dtype=jnp.float32)
    node_states = jax.random.normal(k_nodes, (B, NUM_NODES, NODE_STATE_DIM), dtype=jnp.float32)
    old_actions = jax.random.randint(k_act, (B,), 0, ACTION_DIM)

    probs, values, entropy = actor_critic_forward(
        system_states, node_states, packed, action_dim=ACTION_DIM)
    jax.block_until_ready((probs, values, entropy))

    # ---- pure-JAX reference (unfused, f32) for a correctness check ----
    (we1, be1, we2, be2, wa1, ba1, wa2, ba2, wa3, ba3, wc1, bc1, wc2, bc2, wc3, bc3) = params
    h_ref = jnp.tanh(node_states @ we1 + be1)
    e_ref = h_ref @ we2 + be2
    total = jnp.concatenate([system_states, e_ref.reshape(B, -1)], axis=-1)
    ha = jnp.tanh(jnp.tanh(total @ wa1 + ba1) @ wa2 + ba2)
    logits_ref = ha @ wa3 + ba3
    probs_ref = jax.nn.softmax(logits_ref, axis=-1)
    entropy_ref = -jnp.sum(probs_ref * jax.nn.log_softmax(logits_ref, axis=-1),
                           axis=-1, keepdims=True)
    hc = jnp.tanh(jnp.tanh(total @ wc1 + bc1) @ wc2 + bc2)
    values_ref = hc @ wc3 + bc3

    assert probs.shape == (B, ACTION_DIM) and values.shape == (B, 1) and entropy.shape == (B, 1)
    assert bool(jnp.allclose(jnp.sum(probs, axis=-1), 1.0, atol=1e-2))
    assert bool(jnp.allclose(probs, probs_ref, atol=2e-2, rtol=2e-2))
    assert bool(jnp.allclose(values, values_ref, atol=2e-2, rtol=2e-2))
    assert bool(jnp.allclose(entropy, entropy_ref, atol=2e-2, rtol=2e-2))

    # PPO glue (evaluate semantics): dist.log_prob(old_actions)
    logp_all = jnp.log(probs)
    action_logprobs = jnp.take_along_axis(logp_all, old_actions[:, None], axis=-1)[:, 0]
    # TODO(synk): Categorical sampling (dist.sample) is stochastic -> done with jax.random glue.
    sampled_actions = jax.random.categorical(k_sample, logp_all, axis=-1)
    jax.block_until_ready((action_logprobs, sampled_actions))

    print("KERNEL_OK")
</pallas_src>

<mosaic_0001>
module attributes {stable_mosaic.version = 11 : i64} {
  func.func @actor_critic_kernel(%arg0: i32, %arg1: memref<16x72xbf16, #tpu.memory_space<vmem>>, %arg2: memref<72x384xbf16, #tpu.memory_space<vmem>>, %arg3: memref<256x256xbf16, #tpu.memory_space<vmem>>, %arg4: memref<256x128xbf16, #tpu.memory_space<vmem>>, %arg5: memref<256x128xbf16, #tpu.memory_space<vmem>>, %arg6: memref<2x256xf32, #tpu.memory_space<vmem>>, %arg7: memref<3x128xf32, #tpu.memory_space<vmem>>, %arg8: memref<16x128xf32, #tpu.memory_space<vmem>>) attributes {dimension_semantics = [#tpu.dimension_semantics<parallel>], iteration_bounds = array<i64: 1>, scalar_prefetch = 0 : i64, scratch_operands = 0 : i64, tpu.core_type = #tpu.core_type<tc>, window_params = [{transform_indices = @transform_0, window_bounds = array<i64: 16, 72>}, {pipeline_mode = #tpu.pipeline_mode<synchronous>, transform_indices = @transform_1, window_bounds = array<i64: 72, 384>}, {pipeline_mode = #tpu.pipeline_mode<synchronous>, transform_indices = @transform_2, window_bounds = array<i64: 256, 256>}, {pipeline_mode = #tpu.pipeline_mode<synchronous>, transform_indices = @transform_3, window_bounds = array<i64: 256, 128>}, {pipeline_mode = #tpu.pipeline_mode<synchronous>, transform_indices = @transform_4, window_bounds = array<i64: 256, 128>}, {pipeline_mode = #tpu.pipeline_mode<synchronous>, transform_indices = @transform_5, window_bounds = array<i64: 2, 256>}, {pipeline_mode = #tpu.pipeline_mode<synchronous>, transform_indices = @transform_6, window_bounds = array<i64: 3, 128>}, {transform_indices = @transform_7, window_bounds = array<i64: 16, 128>}]} {
    %c0 = arith.constant 0 : index
    %c0_0 = arith.constant 0 : index
    %0 = vector.load %arg1[%c0, %c0_0] : memref<16x72xbf16, #tpu.memory_space<vmem>>, vector<16x72xbf16>
    %c0_1 = arith.constant 0 : index
    %c0_2 = arith.constant 0 : index
    %1 = vector.load %arg2[%c0_1, %c0_2] : memref<72x384xbf16, #tpu.memory_space<vmem>>, vector<72x384xbf16>
    %cst = arith.constant dense<0.000000e+00> : vector<16x384xf32>
    %2 = tpu.matmul %0, %1, %cst {dimension_numbers = #tpu.dot_dimension_numbers<[1], [0], [0], [1], [0, 0, 1, 1], [], []>} : vector<16x72xbf16>, vector<72x384xbf16>, vector<16x384xf32> -> vector<16x384xf32>
    %3 = vector.extract_strided_slice %2 {offsets = [0, 0], sizes = [16, 256], strides = [1, 1]} : vector<16x384xf32> to vector<16x256xf32>
    %c0_3 = arith.constant 0 : index
    %c0_4 = arith.constant 0 : index
    %4 = vector.load %arg6[%c0_3, %c0_4] : memref<2x256xf32, #tpu.memory_space<vmem>>, vector<1x256xf32>
    %5 = vector.broadcast %4 : vector<1x256xf32> to vector<16x256xf32>
    %6 = arith.addf %3, %5 : vector<16x256xf32>
    %7 = math.tanh %6 : vector<16x256xf32>
    %8 = vector.extract_strided_slice %2 {offsets = [0, 256], sizes = [16, 128], strides = [1, 1]} : vector<16x384xf32> to vector<16x128xf32>
    %9 = arith.truncf %7 : vector<16x256xf32> to vector<16x256xbf16>
    %c0_5 = arith.constant 0 : index
    %c0_6 = arith.constant 0 : index
    %10 = vector.load %arg3[%c0_5, %c0_6] : memref<256x256xbf16, #tpu.memory_space<vmem>>, vector<256x256xbf16>
    %cst_7 = arith.constant dense<0.000000e+00> : vector<16x256xf32>
    %11 = tpu.matmul %9, %10, %cst_7 {dimension_numbers = #tpu.dot_dimension_numbers<[1], [0], [0], [1], [0, 0, 1, 1], [], []>} : vector<16x256xbf16>, vector<256x256xbf16>, vector<16x256xf32> -> vector<16x256xf32>
    %c1 = arith.constant 1 : index
    %c0_8 = arith.constant 0 : index
    %12 = vector.load %arg6[%c1, %c0_8] : memref<2x256xf32, #tpu.memory_space<vmem>>, vector<1x256xf32>
    %13 = vector.broadcast %12 : vector<1x256xf32> to vector<16x256xf32>
    %14 = arith.addf %11, %13 : vector<16x256xf32>
    %15 = arith.truncf %14 : vector<16x256xf32> to vector<16x256xbf16>
    %c0_9 = arith.constant 0 : index
    %c0_10 = arith.constant 0 : index
    %16 = vector.load %arg4[%c0_9, %c0_10] : memref<256x128xbf16, #tpu.memory_space<vmem>>, vector<256x128xbf16>
    %cst_11 = arith.constant dense<0.000000e+00> : vector<16x128xf32>
    %17 = tpu.matmul %15, %16, %cst_11 {dimension_numbers = #tpu.dot_dimension_numbers<[1], [0], [0], [1], [0, 0, 1, 1], [], []>} : vector<16x256xbf16>, vector<256x128xbf16>, vector<16x128xf32> -> vector<16x128xf32>
    %18 = arith.addf %8, %17 : vector<16x128xf32>
    %c0_12 = arith.constant 0 : index
    %c0_13 = arith.constant 0 : index
    %19 = vector.load %arg7[%c0_12, %c0_13] : memref<3x128xf32, #tpu.memory_space<vmem>>, vector<1x128xf32>
    %20 = vector.broadcast %19 : vector<1x128xf32> to vector<16x128xf32>
    %21 = arith.addf %18, %20 : vector<16x128xf32>
    %22 = math.tanh %21 : vector<16x128xf32>
    %23 = arith.truncf %22 : vector<16x128xf32> to vector<16x128xbf16>
    %c0_14 = arith.constant 0 : index
    %c0_15 = arith.constant 0 : index
    %24 = vector.load %arg5[%c0_14, %c0_15] : memref<256x128xbf16, #tpu.memory_space<vmem>>, vector<128x128xbf16>
    %cst_16 = arith.constant dense<0.000000e+00> : vector<16x128xf32>
    %25 = tpu.matmul %23, %24, %cst_16 {dimension_numbers = #tpu.dot_dimension_numbers<[1], [0], [0], [1], [0, 0, 1, 1], [], []>} : vector<16x128xbf16>, vector<128x128xbf16>, vector<16x128xf32> -> vector<16x128xf32>
    %c1_17 = arith.constant 1 : index
    %c0_18 = arith.constant 0 : index
    %26 = vector.load %arg7[%c1_17, %c0_18] : memref<3x128xf32, #tpu.memory_space<vmem>>, vector<1x128xf32>
    %27 = vector.broadcast %26 : vector<1x128xf32> to vector<16x128xf32>
    %28 = arith.addf %25, %27 : vector<16x128xf32>
    %29 = math.tanh %28 : vector<16x128xf32>
    %30 = arith.truncf %29 : vector<16x128xf32> to vector<16x128xbf16>
    %c128 = arith.constant 128 : index
    %c0_19 = arith.constant 0 : index
    %31 = vector.load %arg5[%c128, %c0_19] : memref<256x128xbf16, #tpu.memory_space<vmem>>, vector<128x128xbf16>
    %cst_20 = arith.constant dense<0.000000e+00> : vector<16x128xf32>
    %32 = tpu.matmul %30, %31, %cst_20 {dimension_numbers = #tpu.dot_dimension_numbers<[1], [0], [0], [1], [0, 0, 1, 1], [], []>} : vector<16x128xbf16>, vector<128x128xbf16>, vector<16x128xf32> -> vector<16x128xf32>
    %c2 = arith.constant 2 : index
    %c0_21 = arith.constant 0 : index
    %33 = vector.load %arg7[%c2, %c0_21] : memref<3x128xf32, #tpu.memory_space<vmem>>, vector<1x128xf32>
    %34 = vector.broadcast %33 : vector<1x128xf32> to vector<16x128xf32>
    %35 = arith.addf %32, %34 : vector<16x128xf32>
    %36 = tpu.iota {dimensions = array<i32: 1>} : vector<16x128xi32>
    %c8_i32 = arith.constant 8 : i32
    %37 = vector.broadcast %c8_i32 : i32 to vector<16x128xi32>
    %38 = arith.cmpi slt, %36, %37 : vector<16x128xi32>
    %cst_22 = arith.constant -1.000000e+30 : f32
    %39 = vector.broadcast %cst_22 : f32 to vector<16x128xf32>
    %40 = arith.select %38, %35, %39 : vector<16x128xi1>, vector<16x128xf32>
    %cst_23 = arith.constant dense<0xFF800000> : vector<16xf32>
    %41 = vector.multi_reduction <maximumf>, %40, %cst_23 [1] : vector<16x128xf32> to vector<16xf32>
    %42 = vector.shape_cast %41 : vector<16xf32> to vector<16x1xf32>
    %43 = vector.broadcast %42 : vector<16x1xf32> to vector<16x128xf32>
    %44 = arith.subf %40, %43 : vector<16x128xf32>
    %45 = math.exp %44 : vector<16x128xf32>
    %cst_24 = arith.constant dense<0.000000e+00> : vector<16xf32>
    %46 = vector.multi_reduction <add>, %45, %cst_24 [1] : vector<16x128xf32> to vector<16xf32>
    %47 = vector.shape_cast %46 : vector<16xf32> to vector<16x1xf32>
    %48 = tpu.reciprocal %47 {approx = true} : vector<16x1xf32> -> vector<16x1xf32>
    %49 = vector.broadcast %48 : vector<16x1xf32> to vector<16x128xf32>
    %50 = arith.mulf %45, %49 : vector<16x128xf32>
    %51 = vector.broadcast %42 : vector<16x1xf32> to vector<16x128xf32>
    %52 = arith.subf %40, %51 : vector<16x128xf32>
    %53 = math.log %47 : vector<16x1xf32>
    %54 = vector.broadcast %53 : vector<16x1xf32> to vector<16x128xf32>
    %55 = arith.subf %52, %54 : vector<16x128xf32>
    %56 = arith.mulf %50, %55 : vector<16x128xf32>
    %cst_25 = arith.constant dense<0.000000e+00> : vector<16xf32>
    %57 = vector.multi_reduction <add>, %56, %cst_25 [1] : vector<16x128xf32> to vector<16xf32>
    %58 = vector.shape_cast %57 : vector<16xf32> to vector<16x1xf32>
    %cst_26 = arith.constant 0.000000e+00 : f32
    %59 = vector.broadcast %cst_26 : f32 to vector<16x1xf32>
    %60 = arith.subf %59, %58 : vector<16x1xf32>
    %c8_i32_27 = arith.constant 8 : i32
    %61 = vector.broadcast %c8_i32_27 : i32 to vector<16x128xi32>
    %62 = arith.cmpi slt, %36, %61 : vector<16x128xi32>
    %c8_i32_28 = arith.constant 8 : i32
    %63 = vector.broadcast %c8_i32_28 : i32 to vector<16x128xi32>
    %64 = arith.cmpi eq, %36, %63 : vector<16x128xi32>
    %c9_i32 = arith.constant 9 : i32
    %65 = vector.broadcast %c9_i32 : i32 to vector<16x128xi32>
    %66 = arith.cmpi eq, %36, %65 : vector<16x128xi32>
    %cst_29 = arith.constant 0.000000e+00 : f32
    %67 = vector.shape_cast %60 : vector<16x1xf32> to vector<16x1xf32>
    %68 = vector.broadcast %67 : vector<16x1xf32> to vector<16x128xf32>
    %69 = vector.broadcast %cst_29 : f32 to vector<16x128xf32>
    %70 = arith.select %66, %68, %69 : vector<16x128xi1>, vector<16x128xf32>
    %71 = arith.select %64, %35, %70 : vector<16x128xi1>, vector<16x128xf32>
    %72 = arith.select %62, %50, %71 : vector<16x128xi1>, vector<16x128xf32>
    %c0_30 = arith.constant 0 : index
    %c0_31 = arith.constant 0 : index
    %73 = vector.load %arg8[%c0_30, %c0_31] : memref<16x128xf32, #tpu.memory_space<vmem>>, vector<16x128xf32>
    tpu.vector_store %arg8[%c0_30, %c0_31], %72 {strides = array<i32>} : memref<16x128xf32, #tpu.memory_space<vmem>>, vector<16x128xf32>,
    return
  }
  func.func @transform_0(%arg0: i32) -> (i32, i32) {
    %c0_i32 = arith.constant 0 : i32
    %c0_i32_0 = arith.constant 0 : i32
    return %arg0, %c0_i32 : i32, i32
  }
  func.func @transform_1(%arg0: i32) -> (i32, i32) {
    %c0_i32 = arith.constant 0 : i32
    %c0_i32_0 = arith.constant 0 : i32
    %c0_i32_1 = arith.constant 0 : i32
    return %c0_i32, %c0_i32_0 : i32, i32
  }
  func.func @transform_2(%arg0: i32) -> (i32, i32) {
    %c0_i32 = arith.constant 0 : i32
    %c0_i32_0 = arith.constant 0 : i32
    %c0_i32_1 = arith.constant 0 : i32
    return %c0_i32, %c0_i32_0 : i32, i32
  }
  func.func @transform_3(%arg0: i32) -> (i32, i32) {
    %c0_i32 = arith.constant 0 : i32
    %c0_i32_0 = arith.constant 0 : i32
    %c0_i32_1 = arith.constant 0 : i32
    return %c0_i32, %c0_i32_0 : i32, i32
  }
  func.func @transform_4(%arg0: i32) -> (i32, i32) {
    %c0_i32 = arith.constant 0 : i32
    %c0_i32_0 = arith.constant 0 : i32
    %c0_i32_1 = arith.constant 0 : i32
    return %c0_i32, %c0_i32_0 : i32, i32
  }
  func.func @transform_5(%arg0: i32) -> (i32, i32) {
    %c0_i32 = arith.constant 0 : i32
    %c0_i32_0 = arith.constant 0 : i32
    %c0_i32_1 = arith.constant 0 : i32
    return %c0_i32, %c0_i32_0 : i32, i32
  }
  func.func @transform_6(%arg0: i32) -> (i32, i32) {
    %c0_i32 = arith.constant 0 : i32
    %c0_i32_0 = arith.constant 0 : i32
    %c0_i32_1 = arith.constant 0 : i32
    return %c0_i32, %c0_i32_0 : i32, i32
  }
  func.func @transform_7(%arg0: i32) -> (i32, i32) {
    %c0_i32 = arith.constant 0 : i32
    %c0_i32_0 = arith.constant 0 : i32
    return %arg0, %c0_i32 : i32, i32
  }
}

</mosaic_0001>

<llo_original>
// kernel: actor_critic_forward.1
$region0: #{actor_critic_forward.1}
  #allocation0 [shape = 'u32[]', space=smem, size = 0x4, offset = 0x4, fixed_abs, tag = 'smem constant byte address 0x4 - core index']
  #allocation1 [shape = 'u32[144,128]{1,0:T(1,128)}', space=vmem, size = 0x12000, scoped, tag = 'internal scratch']
  %s0 = inlined_call_operand.vmem [shape: bf16[16,72], index: 0, kind: input, shape index: {}]
  %s1 = inlined_call_operand.vmem [shape: bf16[72,384], index: 1, kind: input, shape index: {}]
  %s2 = inlined_call_operand.hbm [shape: bf16[256,256], index: 2, kind: input, shape index: {}]
  %s3 = inlined_call_operand.hbm [shape: bf16[256,128], index: 3, kind: input, shape index: {}]
  %s4 = inlined_call_operand.hbm [shape: bf16[256,128], index: 4, kind: input, shape index: {}]
  %s5 = inlined_call_operand.hbm [shape: f32[2,256], index: 5, kind: input, shape index: {}]
  %s6 = inlined_call_operand.hbm [shape: f32[3,128], index: 6, kind: input, shape index: {}]
  %s7 = inlined_call_operand.vmem [shape: f32[16,128], index: 7, kind: output, shape index: {}]
  %s8 = sld [smem:[#allocation0]]
  $region58: #{actor_critic_forward.1} parent=0
    _
  %s10 = ssub.s32 1, %s8
  %s11 = scalar_select 0, %s10, %s8
  $region1: #{actor_critic_forward.1} parent=0
    #allocation2 [shape = 'u8[131072]{0}', space=vmem, size = 0x20000, scoped, tag = 'input window, operand 2, single buffered']
    #allocation3 [shape = 's32[1]{0}', space=sflag, size = 0x4, scoped, tag = 'scoped memory for actor_critic_forward.1']
    #allocation4 [shape = 'u8[65536]{0}', space=vmem, size = 0x10000, scoped, tag = 'input window, operand 3, single buffered']
    #allocation5 [shape = 's32[1]{0}', space=sflag, size = 0x4, scoped, tag = 'scoped memory for actor_critic_forward.1']
    #allocation6 [shape = 'u8[65536]{0}', space=vmem, size = 0x10000, scoped, tag = 'input window, operand 4, single buffered']
    #allocation7 [shape = 'u8[2048]{0}', space=vmem, size = 0x800, scoped, tag = 'input window, operand 5, single buffered']
    #allocation8 [shape = 's32[1]{0}', space=sflag, size = 0x4, scoped, tag = 'scoped memory for actor_critic_forward.1']
    #allocation9 [shape = 'u8[2048]{0}', space=vmem, size = 0x800, scoped, tag = 'input window, operand 6, single buffered']
    %12 = vsyncpa [#allocation3], 0
    %13 = vsyncpa [#allocation5], 0
    %14 = vsyncpa [#allocation8], 0
    // Predicated region
    $region2: #{actor_critic_forward.1} parent=1 // pred_check
      _
    $region3: #{actor_critic_forward.1} parent=1 // pred_check_branch
      %16 = sbr.rel (0) target = $region5
    $region4: #{actor_critic_forward.1} parent=1 // pred_region
      _
    $region5: #{actor_critic_forward.1} parent=1 // pred_fallthru
      _
    // Predicated region
    $region6: #{actor_critic_forward.1} parent=1 // pred_check
      _
    $region7: #{actor_critic_forward.1} parent=1 // pred_check_branch
      %18 = sbr.rel (0) target = $region9
    $region8: #{actor_critic_forward.1} parent=1 // pred_region
      _
    $region9: #{actor_critic_forward.1} parent=1 // pred_fallthru
      _
    // Predicated region
    $region10: #{actor_critic_forward.1} parent=1 // pred_check
      _
    $region11: #{actor_critic_forward.1} parent=1 // pred_check_branch
      %20 = sbr.rel (0) target = $region13
    $region12: #{actor_critic_forward.1} parent=1 // pred_region
      %s22 = ssub.s32 4096, 4096
      %23 = vsyncadd [#allocation3], %s22
      %s24 = sshll.u32 [#allocation2], 4
      %s25 = int_to_ptr.vmem [resolvable:$true] %s24
      %30 = dma.hbm_to_vmem [thread:$0]  %s2, 4096, %s25, [#allocation3], 128, 128, 8
    $region13: #{actor_critic_forward.1} parent=1 // pred_fallthru
      _
    // Predicated region
    $region14: #{actor_critic_forward.1} parent=1 // pred_check
      _
    $region15: #{actor_critic_forward.1} parent=1 // pred_check_branch
      %32 = sbr.rel (0) target = $region17
    $region16: #{actor_critic_forward.1} parent=1 // pred_region
      %s34 = ssub.s32 2048, 2048
      %35 = vsyncadd [#allocation5], %s34
      %s36 = sshll.u32 [#allocation4], 4
      %s37 = int_to_ptr.vmem [resolvable:$true] %s36
      %42 = dma.hbm_to_vmem [thread:$0]  %s3, 2048, %s37, [#allocation5], 64, 64, 4
    $region17: #{actor_critic_forward.1} parent=1 // pred_fallthru
      _
    // Predicated region
    $region18: #{actor_critic_forward.1} parent=1 // pred_check
      _
    $region19: #{actor_critic_forward.1} parent=1 // pred_check_branch
      %44 = sbr.rel (0) target = $region21
    $region20: #{actor_critic_forward.1} parent=1 // pred_region
      %s46 = ssub.s32 2048, 2048
      %47 = vsyncadd [#allocation5], %s46
      %s48 = sshll.u32 [#allocation6], 4
      %s49 = int_to_ptr.vmem [resolvable:$true] %s48
      %54 = dma.hbm_to_vmem [thread:$0]  %s4, 2048, %s49, [#allocation5], 64, 64, 4
    $region21: #{actor_critic_forward.1} parent=1 // pred_fallthru
      _
    // Predicated region
    $region22: #{actor_critic_forward.1} parent=1 // pred_check
      _
    $region23: #{actor_critic_forward.1} parent=1 // pred_check_branch
      %56 = sbr.rel (0) target = $region25
    $region24: #{actor_critic_forward.1} parent=1 // pred_region
      %s58 = ssub.s32 64, 64
      %59 = vsyncadd [#allocation8], %s58
      %s61 = sshll.u32 [#allocation7], 4
      %s62 = int_to_ptr.vmem [resolvable:$true] %s61
      %64 = dma.hbm_to_vmem [thread:$0]  %s5, 64, %s62, [#allocation8]
    $region25: #{actor_critic_forward.1} parent=1 // pred_fallthru
      _
    // Predicated region
    $region26: #{actor_critic_forward.1} parent=1 // pred_check
      _
    $region27: #{actor_critic_forward.1} parent=1 // pred_check_branch
      %66 = sbr.rel (0) target = $region29
    $region28: #{actor_critic_forward.1} parent=1 // pred_region
      %s68 = ssub.s32 64, 64
      %69 = vsyncadd [#allocation8], %s68
      %s71 = sshll.u32 [#allocation9], 4
      %s72 = int_to_ptr.vmem [resolvable:$true] %s71
      %74 = dma.hbm_to_vmem [thread:$0]  %s6, 64, %s72, [#allocation8]
    $region29: #{actor_critic_forward.1} parent=1 // pred_fallthru
      _
    // Predicated region
    $region30: #{actor_critic_forward.1} parent=1 // pred_check
      _
    $region31: #{actor_critic_forward.1} parent=1 // pred_check_branch
      %76 = sbr.rel (0) target = $region33
    $region32: #{actor_critic_forward.1} parent=1 // pred_region
      %77 = dma.done [#allocation3], 4096
    $region33: #{actor_critic_forward.1} parent=1 // pred_fallthru
      _
    // Predicated region
    $region34: #{actor_critic_forward.1} parent=1 // pred_check
      _
    $region35: #{actor_critic_forward.1} parent=1 // pred_check_branch
      %79 = sbr.rel (0) target = $region37
    $region36: #{actor_critic_forward.1} parent=1 // pred_region
      %80 = dma.done [#allocation5], 2048
    $region37: #{actor_critic_forward.1} parent=1 // pred_fallthru
      _
    // Predicated region
    $region38: #{actor_critic_forward.1} parent=1 // pred_check
      _
    $region39: #{actor_critic_forward.1} parent=1 // pred_check_branch
      %82 = sbr.rel (0) target = $region41
    $region40: #{actor_critic_forward.1} parent=1 // pred_region
      %83 = dma.done [#allocation5], 2048
    $region41: #{actor_critic_forward.1} parent=1 // pred_fallthru
      _
    // Predicated region
    $region42: #{actor_critic_forward.1} parent=1 // pred_check
      _
    $region43: #{actor_critic_forward.1} parent=1 // pred_check_branch
      %85 = sbr.rel (0) target = $region45
    $region44: #{actor_critic_forward.1} parent=1 // pred_region
      %86 = dma.done [#allocation8], 64
    $region45: #{actor_critic_forward.1} parent=1 // pred_fallthru
      _
    // Predicated region
    $region46: #{actor_critic_forward.1} parent=1 // pred_check
      _
    $region47: #{actor_critic_forward.1} parent=1 // pred_check_branch
      %88 = sbr.rel (0) target = $region49
    $region48: #{actor_critic_forward.1} parent=1 // pred_region
      %89 = dma.done [#allocation8], 64
    $region49: #{actor_critic_forward.1} parent=1 // pred_fallthru
      _
    %v91 = vld [vmem:[%s0] sm:$0xf]
    %v92 = vld [vmem:[%s0 + $0x4] sm:$0xf]
    %v93 = vld [vmem:[%s1] sm:$0xff]
    %v94 = vld [vmem:[%s1 + $0x8] sm:$0xf]
    %v95 = vld [vmem:[%s1 + $0xc] sm:$0xff]
    %v96 = vld [vmem:[%s1 + $0x14] sm:$0xf]
    %v97 = vld [vmem:[%s1 + $0x18] sm:$0xff]
    %v98 = vld [vmem:[%s1 + $0x20] sm:$0xf]
    %v99 = vld [vmem:[%s1 + $0x24] sm:$0xff]
    %v100 = vld [vmem:[%s1 + $0x2c] sm:$0xf]
    %v101 = vld [vmem:[%s1 + $0x30] sm:$0xff]
    %v102 = vld [vmem:[%s1 + $0x38] sm:$0xf]
    %v103 = vld [vmem:[%s1 + $0x3c] sm:$0xff]
    %v104 = vld [vmem:[%s1 + $0x44] sm:$0xf]
    %v105 = vld [vmem:[%s1 + $0x48] sm:$0xff]
    %v106 = vld [vmem:[%s1 + $0x50] sm:$0xf]
    %v107 = vld [vmem:[%s1 + $0x54] sm:$0xff]
    %v108 = vld [vmem:[%s1 + $0x5c] sm:$0xf]
    %v109 = vld [vmem:[%s1 + $0x60] sm:$0xff]
    %v110 = vld [vmem:[%s1 + $0x68] sm:$0xf]
    %v113 = vunpack.c.l.b16 %v91
    %v114 = vunpack.c.l.b16 %v92
    %v115 = vpack.c.b16 %v114, %v113
    %v134 = vunpack.c.l.b16 %v93
    %v135 = vunpack.c.h.b16 %v93
    %v136 = vunpack.c.l.b16 %v94
    %v137 = vunpack.c.l.b16 %v95
    %v138 = vunpack.c.h.b16 %v95
    %v139 = vunpack.c.l.b16 %v96
    %v140 = vunpack.c.l.b16 %v97
    %v141 = vunpack.c.h.b16 %v97
    %v142 = vunpack.c.l.b16 %v98
    %v143 = vunpack.c.l.b16 %v99
    %v144 = vunpack.c.h.b16 %v99
    %v145 = vunpack.c.l.b16 %v100
    %v146 = vunpack.c.l.b16 %v101
    %v147 = vunpack.c.h.b16 %v101
    %v148 = vunpack.c.l.b16 %v102
    %v149 = vunpack.c.l.b16 %v103
    %v150 = vunpack.c.h.b16 %v103
    %v151 = vunpack.c.l.b16 %v104
    %v152 = vunpack.c.l.b16 %v105
    %v153 = vunpack.c.h.b16 %v105
    %v154 = vunpack.c.l.b16 %v106
    %v155 = vunpack.c.l.b16 %v107
    %v156 = vunpack.c.h.b16 %v107
    %v157 = vunpack.c.l.b16 %v108
    %v158 = vunpack.c.l.b16 %v109
    %v159 = vunpack.c.h.b16 %v109
    %v160 = vunpack.c.l.b16 %v110
    %v161 = vpack.c.b16 %v137, %v134
    %v162 = vpack.c.b16 %v138, %v135
    %v163 = vpack.c.b16 %v139, %v136
    %v164 = vpack.c.b16 %v143, %v140
    %v165 = vpack.c.b16 %v144, %v141
    %v166 = vpack.c.b16 %v145, %v142
    %v167 = vpack.c.b16 %v149, %v146
    %v168 = vpack.c.b16 %v150, %v147
    %v169 = vpack.c.b16 %v151, %v148
    %v170 = vpack.c.b16 %v155, %v152
    %v171 = vpack.c.b16 %v156, %v153
    %v172 = vpack.c.b16 %v157, %v154
    %v173 = vpack.c.b16 %v158, %v158
    %v174 = vpack.c.b16 %v159, %v159
    %v175 = vpack.c.b16 %v160, %v160
    %vm188 = vcmask 588800
    %v190 = vsel %vm188, %v115, 0
    %vm192 = vcmask 1043456
    %v194 = vsel %vm192, %v173, 0
    %v197 = vsel %vm192, %v174, 0
    %v200 = vsel %vm192, %v175, 0
    %202 = vmatprep.subr.bf16.mxu0 %v162
    %203 = vmatpush1.bf16.msra.mxu0 %v161
    %204 = vmatprep.subr.bf16.mxu0 %v165
    %205 = vmatpush1.bf16.msra.mxu0 %v164
    %206 = vmatprep.subr.bf16.mxu0 %v168
    %207 = vmatpush1.bf16.msra.mxu0 %v167
    %208 = vmatprep.subr.bf16.mxu0 %v171
    %209 = vmatpush1.bf16.msra.mxu0 %v170
    %210 = vmatprep.subr.bf16.mxu0 %v197
    %211 = vmatpush1.bf16.msra.mxu0 %v194
    %212 = vmatprep.subr.bf16.mxu0 0
    %213 = vmatpush1.bf16.msra.mxu0 0
    %214 = vmatprep.subr.bf16.mxu0 0
    %215 = vmatpush1.bf16.msra.mxu0 0
    %216 = vmatprep.subr.bf16.mxu0 0
    %217 = vmatpush1.bf16.msra.mxu0 0
    %218 = vmatprep.subr.bf16.mxu0 0
    %219 = vmatpush1.bf16.msra.mxu0 0
    %220 = vmatprep.subr.bf16.mxu0 0
    %221 = vmatpush1.bf16.msra.mxu0 0
    %222 = vmatprep.subr.bf16.mxu0 0
    %223 = vmatpush1.bf16.msra.mxu0 0
    %224 = vmatprep.subr.bf16.mxu0 0
    %225 = vmatpush1.bf16.msra.mxu0 0
    %226 = vmatprep.subr.bf16.mxu0 0
    %227 = vmatpush1.bf16.msra.mxu0 0
    %228 = vmatprep.subr.bf16.mxu0 0
    %229 = vmatpush1.bf16.msra.mxu0 0
    %230 = vmatprep.subr.bf16.mxu0 0
    %231 = vmatpush1.bf16.msra.mxu0 0
    %232 = vmatprep.subr.bf16.mxu0 0
    %233 = vmatpush1.bf16.msra.mxu0 0
    %234 = vmatprep.mubr.bf16.mxu0 0
    %235 = vmatmul.mubr.bf16.gmra.mrb[0].mxu0 %v190
    %v236 = vpop.f32.mrb[0].mxu0
    %v237 = vadd.f32 0.0, %v236
    %v238 = vpop.f32.mrb[0].mxu0
    %v239 = vadd.f32 0.0, %v238
    %v240 = vpop.f32.mrb[0].mxu0
    %v241 = vadd.f32 0.0, %v240
    %v242 = vpop.f32.mrb[0].mxu0
    %v243 = vadd.f32 0.0, %v242
    %244 = vdwg.mxu0
    %245 = vmatprep.subr.bf16.mxu0 0
    %246 = vmatpush1.bf16.msra.mxu0 %v163
    %247 = vmatprep.subr.bf16.mxu0 0
    %248 = vmatpush1.bf16.msra.mxu0 %v166
    %249 = vmatprep.subr.bf16.mxu0 0
    %250 = vmatpush1.bf16.msra.mxu0 %v169
    %251 = vmatprep.subr.bf16.mxu0 0
    %252 = vmatpush1.bf16.msra.mxu0 %v172
    %253 = vmatprep.subr.bf16.mxu0 0
    %254 = vmatpush1.bf16.msra.mxu0 %v200
    %255 = vmatprep.subr.bf16.mxu0 0
    %256 = vmatpush1.bf16.msra.mxu0 0
    %257 = vmatprep.subr.bf16.mxu0 0
    %258 = vmatpush1.bf16.msra.mxu0 0
    %259 = vmatprep.subr.bf16.mxu0 0
    %260 = vmatpush1.bf16.msra.mxu0 0
    %261 = vmatprep.subr.bf16.mxu0 0
    %262 = vmatpush1.bf16.msra.mxu0 0
    %263 = vmatprep.subr.bf16.mxu0 0
    %264 = vmatpush1.bf16.msra.mxu0 0
    %265 = vmatprep.subr.bf16.mxu0 0
    %266 = vmatpush1.bf16.msra.mxu0 0
    %267 = vmatprep.subr.bf16.mxu0 0
    %268 = vmatpush1.bf16.msra.mxu0 0
    %269 = vmatprep.subr.bf16.mxu0 0
    %270 = vmatpush1.bf16.msra.mxu0 0
    %271 = vmatprep.subr.bf16.mxu0 0
    %272 = vmatpush1.bf16.msra.mxu0 0
    %273 = vmatprep.subr.bf16.mxu0 0
    %274 = vmatpush1.bf16.msra.mxu0 0
    %275 = vmatprep.subr.bf16.mxu0 0
    %276 = vmatpush1.bf16.msra.mxu0 0
    %277 = vmatprep.mubr.bf16.mxu0 0
    %278 = vmatmul.mubr.bf16.gmra.mrb[0].mxu0 %v190
    %v279 = vpop.f32.mrb[0].mxu0
    %v280 = vadd.f32 0.0, %v279
    %v281 = vpop.f32.mrb[0].mxu0
    %v282 = vpop.f32.mrb[0].mxu0
    %v283 = vadd.f32 0.0, %v282
    %v284 = vpop.f32.mrb[0].mxu0
    %285 = vdwg.mxu0
    %v286 = vld [vmem:[#allocation7] ss:$2 sm:$0x3]
    %v288 = vlaneseq
    %v289 = vshrl.u32 %v288, 7
    %v290 = vsub.s32 0, %v289
    %v291 = vrot.slane %v286, %v290
    %v292 = vlaneseq
    %v293 = vshrl.u32 %v292, 7
    %v294 = vsub.s32 1, %v293
    %v295 = vrot.slane %v286, %v294
    %v298 = vadd.f32 %v237, %v291
    %v299 = vadd.f32 %v239, %v295
    %v300 = vadd.f32 %v241, %v291
    %v301 = vadd.f32 %v243, %v295
    %v302 = vtanh.pop %v298
    %v303 = vtanh.pop %v299
    %v304 = vtanh.pop %v300
    %v305 = vtanh.pop %v301
    %v306 = vpack.c.bf16 %v304, %v302
    %v307 = vpack.c.bf16 %v305, %v303
    %v308 = vld [vmem:[#allocation2] sm:$0xff]
    %v309 = vld [vmem:[#allocation2 + $0x8] sm:$0xff]
    %v310 = vld [vmem:[#allocation2 + $0x10] sm:$0xff]
    %v311 = vld [vmem:[#allocation2 + $0x18] sm:$0xff]
    %v312 = vld [vmem:[#allocation2 + $0x20] sm:$0xff]
    %v313 = vld [vmem:[#allocation2 + $0x28] sm:$0xff]
    %v314 = vld [vmem:[#allocation2 + $0x30] sm:$0xff]
    %v315 = vld [vmem:[#allocation2 + $0x38] sm:$0xff]
    %v316 = vld [vmem:[#allocation2 + $0x40] sm:$0xff]
    %v317 = vld [vmem:[#allocation2 + $0x48] sm:$0xff]
    %v318 = vld [vmem:[#allocation2 + $0x50] sm:$0xff]
    %v319 = vld [vmem:[#allocation2 + $0x58] sm:$0xff]
    %v320 = vld [vmem:[#allocation2 + $0x60] sm:$0xff]
    %v321 = vld [vmem:[#allocation2 + $0x68] sm:$0xff]
    %v322 = vld [vmem:[#allocation2 + $0x70] sm:$0xff]
    %v323 = vld [vmem:[#allocation2 + $0x78] sm:$0xff]
    %v324 = vld [vmem:[#allocation2 + $0x80] sm:$0xff]
    %v325 = vld [vmem:[#allocation2 + $0x88] sm:$0xff]
    %v326 = vld [vmem:[#allocation2 + $0x90] sm:$0xff]
    %v327 = vld [vmem:[#allocation2 + $0x98] sm:$0xff]
    %v328 = vld [vmem:[#allocation2 + $0xa0] sm:$0xff]
    %v329 = vld [vmem:[#allocation2 + $0xa8] sm:$0xff]
    %v330 = vld [vmem:[#allocation2 + $0xb0] sm:$0xff]
    %v331 = vld [vmem:[#allocation2 + $0xb8] sm:$0xff]
    %v332 = vld [vmem:[#allocation2 + $0xc0] sm:$0xff]
    %v333 = vld [vmem:[#allocation2 + $0xc8] sm:$0xff]
    %v334 = vld [vmem:[#allocation2 + $0xd0] sm:$0xff]
    %v335 = vld [vmem:[#allocation2 + $0xd8] sm:$0xff]
    %v336 = vld [vmem:[#allocation2 + $0xe0] sm:$0xff]
    %v337 = vld [vmem:[#allocation2 + $0xe8] sm:$0xff]
    %v338 = vld [vmem:[#allocation2 + $0xf0] sm:$0xff]
    %v339 = vld [vmem:[#allocation2 + $0xf8] sm:$0xff]
    %s340 = scalar_lea.vmem [#allocation7], 1
    %v341 = vld [vmem:[%s340] ss:$2 sm:$0x3]
    %v343 = vlaneseq
    %v344 = vshrl.u32 %v343, 7
    %v345 = vsub.s32 0, %v344
    %v346 = vrot.slane %v341, %v345
    %v347 = vlaneseq
    %v348 = vshrl.u32 %v347, 7
    %v349 = vsub.s32 1, %v348
    %v350 = vrot.slane %v341, %v349
    %v385 = vunpack.c.l.b16 %v308
    %v386 = vunpack.c.h.b16 %v308
    %v387 = vunpack.c.l.b16 %v309
    %v388 = vunpack.c.h.b16 %v309
    %v389 = vunpack.c.l.b16 %v310
    %v390 = vunpack.c.h.b16 %v310
    %v391 = vunpack.c.l.b16 %v311
    %v392 = vunpack.c.h.b16 %v311
    %v393 = vunpack.c.l.b16 %v312
    %v394 = vunpack.c.h.b16 %v312
    %v395 = vunpack.c.l.b16 %v313
    %v396 = vunpack.c.h.b16 %v313
    %v397 = vunpack.c.l.b16 %v314
    %v398 = vunpack.c.h.b16 %v314
    %v399 = vunpack.c.l.b16 %v315
    %v400 = vunpack.c.h.b16 %v315
    %v401 = vunpack.c.l.b16 %v316
    %v402 = vunpack.c.h.b16 %v316
    %v403 = vunpack.c.l.b16 %v317
    %v404 = vunpack.c.h.b16 %v317
    %v405 = vunpack.c.l.b16 %v318
    %v406 = vunpack.c.h.b16 %v318
    %v407 = vunpack.c.l.b16 %v319
    %v408 = vunpack.c.h.b16 %v319
    %v409 = vunpack.c.l.b16 %v320
    %v410 = vunpack.c.h.b16 %v320
    %v411 = vunpack.c.l.b16 %v321
    %v412 = vunpack.c.h.b16 %v321
    %v413 = vunpack.c.l.b16 %v322
    %v414 = vunpack.c.h.b16 %v322
    %v415 = vunpack.c.l.b16 %v323
    %v416 = vunpack.c.h.b16 %v323
    %v417 = vunpack.c.l.b16 %v324
    %v418 = vunpack.c.h.b16 %v324
    %v419 = vunpack.c.l.b16 %v325
    %v420 = vunpack.c.h.b16 %v325
    %v421 = vunpack.c.l.b16 %v326
    %v422 = vunpack.c.h.b16 %v326
    %v423 = vunpack.c.l.b16 %v327
    %v424 = vunpack.c.h.b16 %v327
    %v425 = vunpack.c.l.b16 %v328
    %v426 = vunpack.c.h.b16 %v328
    %v427 = vunpack.c.l.b16 %v329
    %v428 = vunpack.c.h.b16 %v329
    %v429 = vunpack.c.l.b16 %v330
    %v430 = vunpack.c.h.b16 %v330
    %v431 = vunpack.c.l.b16 %v331
    %v432 = vunpack.c.h.b16 %v331
    %v433 = vunpack.c.l.b16 %v332
    %v434 = vunpack.c.h.b16 %v332
    %v435 = vunpack.c.l.b16 %v333
    %v436 = vunpack.c.h.b16 %v333
    %v437 = vunpack.c.l.b16 %v334
    %v438 = vunpack.c.h.b16 %v334
    %v439 = vunpack.c.l.b16 %v335
    %v440 = vunpack.c.h.b16 %v335
    %v441 = vunpack.c.l.b16 %v336
    %v442 = vunpack.c.h.b16 %v336
    %v443 = vunpack.c.l.b16 %v337
    %v444 = vunpack.c.h.b16 %v337
    %v445 = vunpack.c.l.b16 %v338
    %v446 = vunpack.c.h.b16 %v338
    %v447 = vunpack.c.l.b16 %v339
    %v448 = vunpack.c.h.b16 %v339
    %v449 = vpack.c.b16 %v387, %v385
    %v450 = vpack.c.b16 %v388, %v386
    %v451 = vpack.c.b16 %v391, %v389
    %v452 = vpack.c.b16 %v392, %v390
    %v453 = vpack.c.b16 %v395, %v393
    %v454 = vpack.c.b16 %v396, %v394
    %v455 = vpack.c.b16 %v399, %v397
    %v456 = vpack.c.b16 %v400, %v398
    %v457 = vpack.c.b16 %v403, %v401
    %v458 = vpack.c.b16 %v404, %v402
    %v459 = vpack.c.b16 %v407, %v405
    %v460 = vpack.c.b16 %v408, %v406
    %v461 = vpack.c.b16 %v411, %v409
    %v462 = vpack.c.b16 %v412, %v410
    %v463 = vpack.c.b16 %v415, %v413
    %v464 = vpack.c.b16 %v416, %v414
    %v465 = vpack.c.b16 %v419, %v417
    %v466 = vpack.c.b16 %v420, %v418
    %v467 = vpack.c.b16 %v423, %v421
    %v468 = vpack.c.b16 %v424, %v422
    %v469 = vpack.c.b16 %v427, %v425
    %v470 = vpack.c.b16 %v428, %v426
    %v471 = vpack.c.b16 %v431, %v429
    %v472 = vpack.c.b16 %v432, %v430
    %v473 = vpack.c.b16 %v435, %v433
    %v474 = vpack.c.b16 %v436, %v434
    %v475 = vpack.c.b16 %v439, %v437
    %v476 = vpack.c.b16 %v440, %v438
    %v477 = vpack.c.b16 %v443, %v441
    %v478 = vpack.c.b16 %v444, %v442
    %v479 = vpack.c.b16 %v447, %v445
    %v480 = vpack.c.b16 %v448, %v446
    %513 = vmatprep.subr.bf16.mxu0 %v450
    %514 = vmatpush1.bf16.msra.mxu0 %v449
    %515 = vmatprep.subr.bf16.mxu0 %v452
    %516 = vmatpush1.bf16.msra.mxu0 %v451
    %517 = vmatprep.subr.bf16.mxu0 %v454
    %518 = vmatpush1.bf16.msra.mxu0 %v453
    %519 = vmatprep.subr.bf16.mxu0 %v456
    %520 = vmatpush1.bf16.msra.mxu0 %v455
    %521 = vmatprep.subr.bf16.mxu0 %v458
    %522 = vmatpush1.bf16.msra.mxu0 %v457
    %523 = vmatprep.subr.bf16.mxu0 %v460
    %524 = vmatpush1.bf16.msra.mxu0 %v459
    %525 = vmatprep.subr.bf16.mxu0 %v462
    %526 = vmatpush1.bf16.msra.mxu0 %v461
    %527 = vmatprep.subr.bf16.mxu0 %v464
    %528 = vmatpush1.bf16.msra.mxu0 %v463
    %529 = vmatprep.subr.bf16.mxu0 %v466
    %530 = vmatpush1.bf16.msra.mxu0 %v465
    %531 = vmatprep.subr.bf16.mxu0 %v468
    %532 = vmatpush1.bf16.msra.mxu0 %v467
    %533 = vmatprep.subr.bf16.mxu0 %v470
    %534 = vmatpush1.bf16.msra.mxu0 %v469
    %535 = vmatprep.subr.bf16.mxu0 %v472
    %536 = vmatpush1.bf16.msra.mxu0 %v471
    %537 = vmatprep.subr.bf16.mxu0 %v474
    %538 = vmatpush1.bf16.msra.mxu0 %v473
    %539 = vmatprep.subr.bf16.mxu0 %v476
    %540 = vmatpush1.bf16.msra.mxu0 %v475
    %541 = vmatprep.subr.bf16.mxu0 %v478
    %542 = vmatpush1.bf16.msra.mxu0 %v477
    %543 = vmatprep.subr.bf16.mxu0 %v480
    %544 = vmatpush1.bf16.msra.mxu0 %v479
    %545 = vmatprep.mubr.bf16.mxu0 %v307
    %546 = vmatmul.mubr.bf16.gmra.mrb[0].mxu0 %v306
    %v547 = vpop.f32.mrb[0].mxu0
    %v548 = vadd.f32 %v346, %v547
    %v549 = vpop.f32.mrb[0].mxu0
    %v550 = vadd.f32 %v350, %v549
    %v551 = vpop.f32.mrb[0].mxu0
    %v552 = vadd.f32 %v346, %v551
    %v553 = vpop.f32.mrb[0].mxu0
    %v554 = vadd.f32 %v350, %v553
    %555 = vdwg.mxu0
    %v556 = vpack.c.bf16 %v552, %v548
    %v557 = vpack.c.bf16 %v554, %v550
    %v558 = vld [vmem:[#allocation4] sm:$0xf]
    %v559 = vld [vmem:[#allocation4 + $0x4] sm:$0xf]
    %v560 = vld [vmem:[#allocation4 + $0x8] sm:$0xf]
    %v561 = vld [vmem:[#allocation4 + $0xc] sm:$0xf]
    %v562 = vld [vmem:[#allocation4 + $0x10] sm:$0xf]
    %v563 = vld [vmem:[#allocation4 + $0x14] sm:$0xf]
    %v564 = vld [vmem:[#allocation4 + $0x18] sm:$0xf]
    %v565 = vld [vmem:[#allocation4 + $0x1c] sm:$0xf]
    %v566 = vld [vmem:[#allocation4 + $0x20] sm:$0xf]
    %v567 = vld [vmem:[#allocation4 + $0x24] sm:$0xf]
    %v568 = vld [vmem:[#allocation4 + $0x28] sm:$0xf]
    %v569 = vld [vmem:[#allocation4 + $0x2c] sm:$0xf]
    %v570 = vld [vmem:[#allocation4 + $0x30] sm:$0xf]
    %v571 = vld [vmem:[#allocation4 + $0x34] sm:$0xf]
    %v572 = vld [vmem:[#allocation4 + $0x38] sm:$0xf]
    %v573 = vld [vmem:[#allocation4 + $0x3c] sm:$0xf]
    %v574 = vld [vmem:[#allocation4 + $0x40] sm:$0xf]
    %v575 = vld [vmem:[#allocation4 + $0x44] sm:$0xf]
    %v576 = vld [vmem:[#allocation4 + $0x48] sm:$0xf]
    %v577 = vld [vmem:[#allocation4 + $0x4c] sm:$0xf]
    %v578 = vld [vmem:[#allocation4 + $0x50] sm:$0xf]
    %v579 = vld [vmem:[#allocation4 + $0x54] sm:$0xf]
    %v580 = vld [vmem:[#allocation4 + $0x58] sm:$0xf]
    %v581 = vld [vmem:[#allocation4 + $0x5c] sm:$0xf]
    %v582 = vld [vmem:[#allocation4 + $0x60] sm:$0xf]
    %v583 = vld [vmem:[#allocation4 + $0x64] sm:$0xf]
    %v584 = vld [vmem:[#allocation4 + $0x68] sm:$0xf]
    %v585 = vld [vmem:[#allocation4 + $0x6c] sm:$0xf]
    %v586 = vld [vmem:[#allocation4 + $0x70] sm:$0xf]
    %v587 = vld [vmem:[#allocation4 + $0x74] sm:$0xf]
    %v588 = vld [vmem:[#allocation4 + $0x78] sm:$0xf]
    %v589 = vld [vmem:[#allocation4 + $0x7c] sm:$0xf]
    %v622 = vunpack.c.l.b16 %v558
    %v623 = vunpack.c.l.b16 %v559
    %v624 = vunpack.c.l.b16 %v560
    %v625 = vunpack.c.l.b16 %v561
    %v626 = vunpack.c.l.b16 %v562
    %v627 = vunpack.c.l.b16 %v563
    %v628 = vunpack.c.l.b16 %v564
    %v629 = vunpack.c.l.b16 %v565
    %v630 = vunpack.c.l.b16 %v566
    %v631 = vunpack.c.l.b16 %v567
    %v632 = vunpack.c.l.b16 %v568
    %v633 = vunpack.c.l.b16 %v569
    %v634 = vunpack.c.l.b16 %v570
    %v635 = vunpack.c.l.b16 %v571
    %v636 = vunpack.c.l.b16 %v572
    %v637 = vunpack.c.l.b16 %v573
    %v638 = vunpack.c.l.b16 %v574
    %v639 = vunpack.c.l.b16 %v575
    %v640 = vunpack.c.l.b16 %v576
    %v641 = vunpack.c.l.b16 %v577
    %v642 = vunpack.c.l.b16 %v578
    %v643 = vunpack.c.l.b16 %v579
    %v644 = vunpack.c.l.b16 %v580
    %v645 = vunpack.c.l.b16 %v581
    %v646 = vunpack.c.l.b16 %v582
    %v647 = vunpack.c.l.b16 %v583
    %v648 = vunpack.c.l.b16 %v584
    %v649 = vunpack.c.l.b16 %v585
    %v650 = vunpack.c.l.b16 %v586
    %v651 = vunpack.c.l.b16 %v587
    %v652 = vunpack.c.l.b16 %v588
    %v653 = vunpack.c.l.b16 %v589
    %v654 = vpack.c.b16 %v623, %v622
    %v655 = vpack.c.b16 %v625, %v624
    %v656 = vpack.c.b16 %v627, %v626
    %v657 = vpack.c.b16 %v629, %v628
    %v658 = vpack.c.b16 %v631, %v630
    %v659 = vpack.c.b16 %v633, %v632
    %v660 = vpack.c.b16 %v635, %v634
    %v661 = vpack.c.b16 %v637, %v636
    %v662 = vpack.c.b16 %v639, %v638
    %v663 = vpack.c.b16 %v641, %v640
    %v664 = vpack.c.b16 %v643, %v642
    %v665 = vpack.c.b16 %v645, %v644
    %v666 = vpack.c.b16 %v647, %v646
    %v667 = vpack.c.b16 %v649, %v648
    %v668 = vpack.c.b16 %v651, %v650
    %v669 = vpack.c.b16 %v653, %v652
    %686 = vmatprep.subr.bf16.mxu0 0
    %687 = vmatpush1.bf16.msra.mxu0 %v654
    %688 = vmatprep.subr.bf16.mxu0 0
    %689 = vmatpush1.bf16.msra.mxu0 %v655
    %690 = vmatprep.subr.bf16.mxu0 0
    %691 = vmatpush1.bf16.msra.mxu0 %v656
    %692 = vmatprep.subr.bf16.mxu0 0
    %693 = vmatpush1.bf16.msra.mxu0 %v657
    %694 = vmatprep.subr.bf16.mxu0 0
    %695 = vmatpush1.bf16.msra.mxu0 %v658
    %696 = vmatprep.subr.bf16.mxu0 0
    %697 = vmatpush1.bf16.msra.mxu0 %v659
    %698 = vmatprep.subr.bf16.mxu0 0
    %699 = vmatpush1.bf16.msra.mxu0 %v660
    %700 = vmatprep.subr.bf16.mxu0 0
    %701 = vmatpush1.bf16.msra.mxu0 %v661
    %702 = vmatprep.subr.bf16.mxu0 0
    %703 = vmatpush1.bf16.msra.mxu0 %v662
    %704 = vmatprep.subr.bf16.mxu0 0
    %705 = vmatpush1.bf16.msra.mxu0 %v663
    %706 = vmatprep.subr.bf16.mxu0 0
    %707 = vmatpush1.bf16.msra.mxu0 %v664
    %708 = vmatprep.subr.bf16.mxu0 0
    %709 = vmatpush1.bf16.msra.mxu0 %v665
    %710 = vmatprep.subr.bf16.mxu0 0
    %711 = vmatpush1.bf16.msra.mxu0 %v666
    %712 = vmatprep.subr.bf16.mxu0 0
    %713 = vmatpush1.bf16.msra.mxu0 %v667
    %714 = vmatprep.subr.bf16.mxu0 0
    %715 = vmatpush1.bf16.msra.mxu0 %v668
    %716 = vmatprep.subr.bf16.mxu0 0
    %717 = vmatpush1.bf16.msra.mxu0 %v669
    %718 = vmatprep.mubr.bf16.mxu0 %v557
    %719 = vmatmul.mubr.bf16.gmra.mrb[0].mxu0 %v556
    %v720 = vpop.f32.mrb[0].mxu0
    %v721 = vadd.f32 0.0, %v720
    %v722 = vpop.f32.mrb[0].mxu0
    %v723 = vpop.f32.mrb[0].mxu0
    %v724 = vadd.f32 0.0, %v723
    %v725 = vpop.f32.mrb[0].mxu0
    %726 = vdwg.mxu0
    %v727 = vadd.f32 %v280, %v721
    %v728 = vadd.f32 %v283, %v724
    %v729 = vld [vmem:[#allocation9] sm:$0x1]
    %v730 = vlaneseq
    %v731 = vshrl.u32 %v730, 7
    %v732 = vsub.s32 0, %v731
    %v733 = vrot.slane %v729, %v732
    %v734 = vadd.f32 %v727, %v733
    %v735 = vadd.f32 %v728, %v733
    %v736 = vtanh.pop %v734
    %v737 = vtanh.pop %v735
    %v738 = vpack.c.bf16 %v737, %v736
    %v739 = vld [vmem:[#allocation6] sm:$0xf]
    %v740 = vld [vmem:[#allocation6 + $0x4] sm:$0xf]
    %v741 = vld [vmem:[#allocation6 + $0x8] sm:$0xf]
    %v742 = vld [vmem:[#allocation6 + $0xc] sm:$0xf]
    %v743 = vld [vmem:[#allocation6 + $0x10] sm:$0xf]
    %v744 = vld [vmem:[#allocation6 + $0x14] sm:$0xf]
    %v745 = vld [vmem:[#allocation6 + $0x18] sm:$0xf]
    %v746 = vld [vmem:[#allocation6 + $0x1c] sm:$0xf]
    %v747 = vld [vmem:[#allocation6 + $0x20] sm:$0xf]
    %v748 = vld [vmem:[#allocation6 + $0x24] sm:$0xf]
    %v749 = vld [vmem:[#allocation6 + $0x28] sm:$0xf]
    %v750 = vld [vmem:[#allocation6 + $0x2c] sm:$0xf]
    %v751 = vld [vmem:[#allocation6 + $0x30] sm:$0xf]
    %v752 = vld [vmem:[#allocation6 + $0x34] sm:$0xf]
    %v753 = vld [vmem:[#allocation6 + $0x38] sm:$0xf]
    %v754 = vld [vmem:[#allocation6 + $0x3c] sm:$0xf]
    %v755 = vld [vmem:[#allocation9 + $0x1] sm:$0x1]
    %v756 = vlaneseq
    %v757 = vshrl.u32 %v756, 7
    %v758 = vsub.s32 0, %v757
    %v759 = vrot.slane %v755, %v758
    %v776 = vunpack.c.l.b16 %v739
    %v777 = vunpack.c.l.b16 %v740
    %v778 = vunpack.c.l.b16 %v741
    %v779 = vunpack.c.l.b16 %v742
    %v780 = vunpack.c.l.b16 %v743
    %v781 = vunpack.c.l.b16 %v744
    %v782 = vunpack.c.l.b16 %v745
    %v783 = vunpack.c.l.b16 %v746
    %v784 = vunpack.c.l.b16 %v747
    %v785 = vunpack.c.l.b16 %v748
    %v786 = vunpack.c.l.b16 %v749
    %v787 = vunpack.c.l.b16 %v750
    %v788 = vunpack.c.l.b16 %v751
    %v789 = vunpack.c.l.b16 %v752
    %v790 = vunpack.c.l.b16 %v753
    %v791 = vunpack.c.l.b16 %v754
    %v792 = vpack.c.b16 %v777, %v776
    %v793 = vpack.c.b16 %v779, %v778
    %v794 = vpack.c.b16 %v781, %v780
    %v795 = vpack.c.b16 %v783, %v782
    %v796 = vpack.c.b16 %v785, %v784
    %v797 = vpack.c.b16 %v787, %v786
    %v798 = vpack.c.b16 %v789, %v788
    %v799 = vpack.c.b16 %v791, %v790
    %808 = vmatprep.subr.bf16.mxu0 0
    %809 = vmatpush1.bf16.msra.mxu0 %v792
    %810 = vmatprep.subr.bf16.mxu0 0
    %811 = vmatpush1.bf16.msra.mxu0 %v793
    %812 = vmatprep.subr.bf16.mxu0 0
    %813 = vmatpush1.bf16.msra.mxu0 %v794
    %814 = vmatprep.subr.bf16.mxu0 0
    %815 = vmatpush1.bf16.msra.mxu0 %v795
    %816 = vmatprep.subr.bf16.mxu0 0
    %817 = vmatpush1.bf16.msra.mxu0 %v796
    %818 = vmatprep.subr.bf16.mxu0 0
    %819 = vmatpush1.bf16.msra.mxu0 %v797
    %820 = vmatprep.subr.bf16.mxu0 0
    %821 = vmatpush1.bf16.msra.mxu0 %v798
    %822 = vmatprep.subr.bf16.mxu0 0
    %823 = vmatpush1.bf16.msra.mxu0 %v799
    %824 = vmatprep.subr.bf16.mxu0 0
    %825 = vmatpush1.bf16.msra.mxu0 0
    %826 = vmatprep.subr.bf16.mxu0 0
    %827 = vmatpush1.bf16.msra.mxu0 0
    %828 = vmatprep.subr.bf16.mxu0 0
    %829 = vmatpush1.bf16.msra.mxu0 0
    %830 = vmatprep.subr.bf16.mxu0 0
    %831 = vmatpush1.bf16.msra.mxu0 0
    %832 = vmatprep.subr.bf16.mxu0 0
    %833 = vmatpush1.bf16.msra.mxu0 0
    %834 = vmatprep.subr.bf16.mxu0 0
    %835 = vmatpush1.bf16.msra.mxu0 0
    %836 = vmatprep.subr.bf16.mxu0 0
    %837 = vmatpush1.bf16.msra.mxu0 0
    %838 = vmatprep.subr.bf16.mxu0 0
    %839 = vmatpush1.bf16.msra.mxu0 0
    %840 = vmatprep.mubr.bf16.mxu0 0
    %841 = vmatmul.mubr.bf16.gmra.mrb[0].mxu0 %v738
    %v842 = vpop.f32.mrb[0].mxu0
    %v843 = vadd.f32 %v759, %v842
    %v844 = vpop.f32.mrb[0].mxu0
    %v845 = vpop.f32.mrb[0].mxu0
    %v846 = vadd.f32 %v759, %v845
    %v847 = vpop.f32.mrb[0].mxu0
    %848 = vdwg.mxu0
    %v849 = vtanh.pop %v843
    %v850 = vtanh.pop %v846
    %v851 = vpack.c.bf16 %v850, %v849
    %v852 = vld [vmem:[#allocation6 + $0x40] sm:$0xf]
    %v853 = vld [vmem:[#allocation6 + $0x44] sm:$0xf]
    %v854 = vld [vmem:[#allocation6 + $0x48] sm:$0xf]
    %v855 = vld [vmem:[#allocation6 + $0x4c] sm:$0xf]
    %v856 = vld [vmem:[#allocation6 + $0x50] sm:$0xf]
    %v857 = vld [vmem:[#allocation6 + $0x54] sm:$0xf]
    %v858 = vld [vmem:[#allocation6 + $0x58] sm:$0xf]
    %v859 = vld [vmem:[#allocation6 + $0x5c] sm:$0xf]
    %v860 = vld [vmem:[#allocation6 + $0x60] sm:$0xf]
    %v861 = vld [vmem:[#allocation6 + $0x64] sm:$0xf]
    %v862 = vld [vmem:[#allocation6 + $0x68] sm:$0xf]
    %v863 = vld [vmem:[#allocation6 + $0x6c] sm:$0xf]
    %v864 = vld [vmem:[#allocation6 + $0x70] sm:$0xf]
    %v865 = vld [vmem:[#allocation6 + $0x74] sm:$0xf]
    %v866 = vld [vmem:[#allocation6 + $0x78] sm:$0xf]
    %v867 = vld [vmem:[#allocation6 + $0x7c] sm:$0xf]
    %v868 = vld [vmem:[#allocation9 + $0x2] sm:$0x1]
    %v869 = vlaneseq
    %v870 = vshrl.u32 %v869, 7
    %v871 = vsub.s32 0, %v870
    %v872 = vrot.slane %v868, %v871
    %v889 = vunpack.c.l.b16 %v852
    %v890 = vunpack.c.l.b16 %v853
    %v891 = vunpack.c.l.b16 %v854
    %v892 = vunpack.c.l.b16 %v855
    %v893 = vunpack.c.l.b16 %v856
    %v894 = vunpack.c.l.b16 %v857
    %v895 = vunpack.c.l.b16 %v858
    %v896 = vunpack.c.l.b16 %v859
    %v897 = vunpack.c.l.b16 %v860
    %v898 = vunpack.c.l.b16 %v861
    %v899 = vunpack.c.l.b16 %v862
    %v900 = vunpack.c.l.b16 %v863
    %v901 = vunpack.c.l.b16 %v864
    %v902 = vunpack.c.l.b16 %v865
    %v903 = vunpack.c.l.b16 %v866
    %v904 = vunpack.c.l.b16 %v867
    %v905 = vpack.c.b16 %v890, %v889
    %v906 = vpack.c.b16 %v892, %v891
    %v907 = vpack.c.b16 %v894, %v893
    %v908 = vpack.c.b16 %v896, %v895
    %v909 = vpack.c.b16 %v898, %v897
    %v910 = vpack.c.b16 %v900, %v899
    %v911 = vpack.c.b16 %v902, %v901
    %v912 = vpack.c.b16 %v904, %v903
    %921 = vmatprep.subr.bf16.mxu0 0
    %922 = vmatpush1.bf16.msra.mxu0 %v905
    %923 = vmatprep.subr.bf16.mxu0 0
    %924 = vmatpush1.bf16.msra.mxu0 %v906
    %925 = vmatprep.subr.bf16.mxu0 0
    %926 = vmatpush1.bf16.msra.mxu0 %v907
    %927 = vmatprep.subr.bf16.mxu0 0
    %928 = vmatpush1.bf16.msra.mxu0 %v908
    %929 = vmatprep.subr.bf16.mxu0 0
    %930 = vmatpush1.bf16.msra.mxu0 %v909
    %931 = vmatprep.subr.bf16.mxu0 0
    %932 = vmatpush1.bf16.msra.mxu0 %v910
    %933 = vmatprep.subr.bf16.mxu0 0
    %934 = vmatpush1.bf16.msra.mxu0 %v911
    %935 = vmatprep.subr.bf16.mxu0 0
    %936 = vmatpush1.bf16.msra.mxu0 %v912
    %937 = vmatprep.subr.bf16.mxu0 0
    %938 = vmatpush1.bf16.msra.mxu0 0
    %939 = vmatprep.subr.bf16.mxu0 0
    %940 = vmatpush1.bf16.msra.mxu0 0
    %941 = vmatprep.subr.bf16.mxu0 0
    %942 = vmatpush1.bf16.msra.mxu0 0
    %943 = vmatprep.subr.bf16.mxu0 0
    %944 = vmatpush1.bf16.msra.mxu0 0
    %945 = vmatprep.subr.bf16.mxu0 0
    %946 = vmatpush1.bf16.msra.mxu0 0
    %947 = vmatprep.subr.bf16.mxu0 0
    %948 = vmatpush1.bf16.msra.mxu0 0
    %949 = vmatprep.subr.bf16.mxu0 0
    %950 = vmatpush1.bf16.msra.mxu0 0
    %951 = vmatprep.subr.bf16.mxu0 0
    %952 = vmatpush1.bf16.msra.mxu0 0
    %953 = vmatprep.mubr.bf16.mxu0 0
    %954 = vmatmul.mubr.bf16.gmra.mrb[0].mxu0 %v851
    %v955 = vpop.f32.mrb[0].mxu0
    %v956 = vadd.f32 %v872, %v955
    %v957 = vpop.f32.mrb[0].mxu0
    %v958 = vpop.f32.mrb[0].mxu0
    %v959 = vadd.f32 %v872, %v958
    %v960 = vpop.f32.mrb[0].mxu0
    %961 = vdwg.mxu0
    %v962 = vlaneseq
    %v963 = vand.u32 %v962, 127
    %vm964 = vcmp.lt.s32.totalorder %v963, 8
    %v965 = vsel %vm964, %v956, -1e+30
    %v966 = vsel %vm964, %v959, -1e+30
    %967 = vmax.xlane.f32.xlu0 %v965
    %v968 = vpop.xlane.xlu0 %967
    %969 = vmax.xlane.f32.xlu0 %v966
    %v970 = vpop.xlane.xlu0 %969
    %v971 = vsub.f32 %v965, %v968
    %v972 = vsub.f32 %v966, %v970
    %v973 = vmul.f32 %v971, 1.442695
    %v974 = vpow.pop %v973
    %v975 = vmul.f32 %v972, 1.442695
    %v976 = vpow.pop %v975
    %977 = vadd.xlane.f32.xlu0 %v974
    %v978 = vpop.xlane.xlu0 %977
    %979 = vadd.xlane.f32.xlu0 %v976
    %v980 = vpop.xlane.xlu0 %979
    %v981 = vrcp.pop %v978
    %v982 = vrcp.pop %v980
    %v983 = vmul.f32 %v974, %v981
    %v984 = vmul.f32 %v976, %v982
    %v985 = vlog2.pop %v978
    %v986 = vmul.f32 %v985, 0.6931472
    %v987 = vlog2.pop %v980
    %v988 = vmul.f32 %v987, 0.6931472
    %v989 = vsub.f32 %v971, %v986
    %v990 = vsub.f32 %v972, %v988
    %v991 = vmul.f32 %v983, %v989
    %v992 = vmul.f32 %v984, %v990
    %993 = vadd.xlane.f32.xlu0 %v991
    %v994 = vpop.xlane.xlu0 %993
    %995 = vadd.xlane.f32.xlu0 %v992
    %v996 = vpop.xlane.xlu0 %995
    %v997 = vsub.f32 0.0, %v994
    %v998 = vsub.f32 0.0, %v996
    %vm999 = vcmp.eq.s32.totalorder %v963, 8
    %vm1000 = vcmp.eq.s32.totalorder %v963, 9
    %v1001 = vsel %vm1000, %v997, 0.0
    %v1002 = vsel %vm1000, %v998, 0.0
    %v1003 = vsel %vm999, %v956, %v1001
    %v1004 = vsel %vm999, %v959, %v1002
    %v1005 = vsel %vm964, %v983, %v1003
    %v1006 = vsel %vm964, %v984, %v1004
    %1007 = vst [vmem:[%s7] sm:$0xff] %v1005
    %1008 = vst [vmem:[%s7 + $0x8] sm:$0xff] %v1006
    // Predicated region
    $region50: #{actor_critic_forward.1} parent=1 // pred_check
      _
    $region51: #{actor_critic_forward.1} parent=1 // pred_check_branch
      %1010 = sbr.rel (0) target = $region53
    $region52: #{actor_critic_forward.1} parent=1 // pred_region
      _
    $region53: #{actor_critic_forward.1} parent=1 // pred_fallthru
      _
    // Predicated region
    $region54: #{actor_critic_forward.1} parent=1 // pred_check
      _
    $region55: #{actor_critic_forward.1} parent=1 // pred_check_branch
      %1012 = sbr.rel (0) target = $region57
    $region56: #{actor_critic_forward.1} parent=1 // pred_region
      _
    $region57: #{actor_critic_forward.1} parent=1 // pred_fallthru
      _
    %1013 = vsyncpa [#allocation3], 1
    %1014 = vsyncpa [#allocation5], 1
    %1015 = vsyncpa [#allocation8], 1

</llo_original>
